<compile_context>
chip_gen: v7x
topology: tpu7x:2x2x1
jax: 0.10.0
libtpu: 0.0.40
codegen_flags: <defaults>
</compile_context>

<pallas_src>
import functools

import jax
import jax.numpy as jnp
from jax import lax
from jax.experimental import pallas as pl
from jax.experimental.pallas import tpu as pltpu
import numpy as np

_LANE = 128


def _round_up(v, m):
    return (v + m - 1) // m * m


def _pick_tile(n_pad, pref):
    """Largest multiple of 128 that is <= pref and divides n_pad."""
    t = max(_LANE, (min(pref, n_pad) // _LANE) * _LANE)
    while n_pad % t != 0:
        t -= _LANE
    return t


def _physical_vmem_bytes():
    try:
        return int(pltpu.get_tpu_info().vmem_capacity_bytes)
    except Exception:
        return 64 * 1024 * 1024  # conservative default (v7x per-TC VMEM)


def _vmem_limit(block_bytes):
    # double-buffered blocks + headroom, clamped to ~75% of physical VMEM
    phys = _physical_vmem_bytes()
    want = 2 * int(block_bytes) + (8 << 20)
    return int(max(32 << 20, min(want, (phys * 3) // 4)))


# ---------------------------------------------------------------------------
# Fused two-layer kernel (small graphs: whole padded graph resident in VMEM,
# single grid step, h1 never leaves VMEM).
# ---------------------------------------------------------------------------
def _gcn_fused_kernel(adj_ref, x_ref, dis_ref, w1_ref, b1_ref, w2_ref, b2_ref,
                      out_ref):
    adj = adj_ref[...].astype(jnp.bfloat16)           # int8 -> bf16 directly
    dis = dis_ref[...]                                 # [N, 1] f32, deg^-1/2

    # --- layer 1: project -> source scale -> aggregate -> target scale ---
    p1 = jnp.dot(x_ref[...].astype(jnp.bfloat16), w1_ref[...],
                 preferred_element_type=jnp.float32)   # [N, H]
    p1 = (dis * p1).astype(jnp.bfloat16)               # dis_j * (x_j @ W1)
    agg1 = jnp.dot(adj, p1, preferred_element_type=jnp.float32)
    h1 = jnp.maximum(dis * agg1 + b1_ref[...], 0.0)    # relu
    # F.dropout(p=0.5, training=False) == identity.

    # --- layer 2: project -> source scale -> aggregate -> target scale ---
    p2 = jnp.dot(h1.astype(jnp.bfloat16), w2_ref[...],
                 preferred_element_type=jnp.float32)   # [N, C]
    p2 = (dis * p2).astype(jnp.bfloat16)
    agg2 = jnp.dot(adj, p2, preferred_element_type=jnp.float32)
    z = dis * agg2 + b2_ref[...]                       # padded class lanes -1e30

    # fused softmax over 128 lanes (padded lanes vanish: exp(-1e30) == 0)
    z = z - jnp.max(z, axis=-1, keepdims=True)
    ez = jnp.exp(z)
    inv = pl.reciprocal(jnp.sum(ez, axis=-1, keepdims=True), approx=True)
    out_ref[...] = (ez * inv).astype(out_ref.dtype)


# ---------------------------------------------------------------------------
# Tiled path, kernel 1: dense projection  p = dis * (h @ W), row-tiled.
# ---------------------------------------------------------------------------
def _project_kernel(h_ref, w_ref, dis_ref, out_ref):
    p = jnp.dot(h_ref[...].astype(jnp.bfloat16), w_ref[...],
                preferred_element_type=jnp.float32)
    out_ref[...] = (dis_ref[...] * p).astype(out_ref.dtype)


def _project_call(h, w_bf16, dis_col, *, tile_m):
    n_pad, f_pad = h.shape
    c_pad = w_bf16.shape[1]
    grid = (n_pad // tile_m,)

    block_bytes = (tile_m * f_pad * h.dtype.itemsize
                   + f_pad * c_pad * 2
                   + tile_m * 4
                   + tile_m * c_pad * 2)
    bytes_accessed = int(h.size * h.dtype.itemsize + w_bf16.size * 2
                         + n_pad * 4 + n_pad * c_pad * 2)

    return pl.pallas_call(
        _project_kernel,
        out_shape=jax.ShapeDtypeStruct((n_pad, c_pad), jnp.bfloat16),
        grid_spec=pltpu.PrefetchScalarGridSpec(
            num_scalar_prefetch=0,
            grid=grid,
            in_specs=[
                pl.BlockSpec((tile_m, f_pad), lambda i: (i, 0)),   # h row tile
                pl.BlockSpec((f_pad, c_pad), lambda i: (0, 0)),    # W, resident
                pl.BlockSpec((tile_m, 1), lambda i: (i, 0)),       # deg^-1/2 rows
            ],
            out_specs=pl.BlockSpec((tile_m, c_pad), lambda i: (i, 0)),
        ),
        compiler_params=pltpu.CompilerParams(
            dimension_semantics=("parallel",),
            vmem_limit_bytes=_vmem_limit(block_bytes)),
        cost_estimate=pl.CostEstimate(
            flops=int(2 * n_pad * f_pad * c_pad),
            transcendentals=0,
            bytes_accessed=bytes_accessed),
    )(h, w_bf16, dis_col)


# ---------------------------------------------------------------------------
# Tiled path, kernel 2: aggregation  out = act(dis_i * (A_hat @ p) + b),
# row-parallel, K-blocked over source nodes with a VMEM f32 accumulator.
# ---------------------------------------------------------------------------
def _aggregate_kernel(adj_ref, p_ref, dis_ref, b_ref, out_ref, acc_ref, *,
                      activation):
    k = pl.program_id(1)

    @pl.when(k == 0)
    def _():
        acc_ref[...] = jnp.zeros_like(acc_ref)

    # int8 adjacency tile cast straight to bf16 for the MXU; p is already bf16.
    acc_ref[...] += jnp.dot(adj_ref[...].astype(jnp.bfloat16), p_ref[...],
                            preferred_element_type=jnp.float32)

    @pl.when(k == pl.num_programs(1) - 1)
    def _():
        z = dis_ref[...] * acc_ref[...] + b_ref[...]
        if activation == "relu":
            out_ref[...] = jnp.maximum(z, 0.0).astype(out_ref.dtype)
        elif activation == "softmax":
            z = z - jnp.max(z, axis=-1, keepdims=True)
            ez = jnp.exp(z)
            inv = pl.reciprocal(jnp.sum(ez, axis=-1, keepdims=True),
                                approx=True)
            out_ref[...] = (ez * inv).astype(out_ref.dtype)
        else:
            out_ref[...] = z.astype(out_ref.dtype)


def _aggregate_call(adj_i8, p_bf16, dis_col, b, *, activation, out_dtype,
                    tile_i, tile_k):
    n_pad = adj_i8.shape[0]
    c_pad = p_bf16.shape[1]
    grid = (n_pad // tile_i, n_pad // tile_k)
    kernel = functools.partial(_aggregate_kernel, activation=activation)

    block_bytes = (tile_i * tile_k                      # adj tile (int8)
                   + tile_k * c_pad * 2                 # p tile (bf16)
                   + tile_i * 4 + c_pad * 4             # dis + bias
                   + tile_i * c_pad * (4 + jnp.dtype(out_dtype).itemsize))
    flops = 2 * n_pad * n_pad * c_pad
    transcendentals = n_pad * (c_pad + 1) if activation == "softmax" else 0
    bytes_accessed = int(adj_i8.size + p_bf16.size * 2 + n_pad * 4 + c_pad * 4
                         + n_pad * c_pad * jnp.dtype(out_dtype).itemsize)

    return pl.pallas_call(
        kernel,
        out_shape=jax.ShapeDtypeStruct((n_pad, c_pad), out_dtype),
        grid_spec=pltpu.PrefetchScalarGridSpec(
            num_scalar_prefetch=0,
            grid=grid,
            in_specs=[
                pl.BlockSpec((tile_i, tile_k), lambda i, k: (i, k)),  # A_hat
                pl.BlockSpec((tile_k, c_pad), lambda i, k: (k, 0)),   # p (src)
                pl.BlockSpec((tile_i, 1), lambda i, k: (i, 0)),       # deg^-1/2
                pl.BlockSpec((1, c_pad), lambda i, k: (0, 0)),        # bias
            ],
            out_specs=pl.BlockSpec((tile_i, c_pad), lambda i, k: (i, 0)),
            scratch_shapes=[pltpu.VMEM((tile_i, c_pad), jnp.float32)],
        ),
        compiler_params=pltpu.CompilerParams(
            dimension_semantics=("parallel", "arbitrary"),
            vmem_limit_bytes=_vmem_limit(block_bytes)),
        cost_estimate=pl.CostEstimate(flops=int(flops),
                                      transcendentals=int(transcendentals),
                                      bytes_accessed=bytes_accessed),
    )(adj_i8, p_bf16, dis_col, b)


# ---------------------------------------------------------------------------
# Glue: sparse edge_index -> dense int8 adjacency (A_hat[dst, src], self loops)
# and deg^-1/2; analogue of PyG's (cacheable) gcn_norm.
# ---------------------------------------------------------------------------
def edge_index_to_dense_adj_int8(edge_index, num_nodes):
    src, dst = edge_index[0], edge_index[1]
    adj = jnp.zeros((num_nodes, num_nodes), jnp.int8).at[dst, src].set(1)
    diag = jnp.arange(num_nodes)
    adj = adj.at[diag, diag].set(1)        # add_self_loops=True
    return adj


def gcn_forward(x, edge_index, params, *, tile_i=256, tile_k=512,
                force_tiled=False):
    n, f_in = x.shape
    hidden = params["w1"].shape[1]
    n_out = params["w2"].shape[1]

    n_pad = _round_up(n, _LANE)
    f_pad = _round_up(f_in, _LANE)
    h_pad = _round_up(hidden, _LANE)
    c_pad = _round_up(n_out, _LANE)

    # --- graph preprocessing (plain-JAX glue) ---
    adj = edge_index_to_dense_adj_int8(edge_index, n)
    adj = jnp.pad(adj, ((0, n_pad - n), (0, n_pad - n)))
    deg = jnp.sum(adj.astype(jnp.float32), axis=1)
    dis = jnp.where(deg > 0.0, lax.rsqrt(jnp.maximum(deg, 1.0)), 0.0)
    dis_col = dis.reshape(n_pad, 1)        # 0 for padded nodes

    # --- lane-dense padded features / parameters (weights shipped as bf16) ---
    x_pad = jnp.pad(x, ((0, n_pad - n), (0, f_pad - f_in)))
    w1 = jnp.pad(params["w1"],
                 ((0, f_pad - f_in), (0, h_pad - hidden))).astype(jnp.bfloat16)
    b1 = jnp.pad(params["b1"], ((0, 0), (0, h_pad - hidden)))
    w2 = jnp.pad(params["w2"],
                 ((0, h_pad - hidden), (0, c_pad - n_out))).astype(jnp.bfloat16)
    # -1e30 in padded class lanes => padded lanes vanish in the fused softmax.
    b2 = jnp.concatenate(
        [params["b2"], jnp.full((1, c_pad - n_out), -1e30, jnp.float32)],
        axis=1)

    # rough VMEM working-set estimate for the fused single-step kernel
    fused_bytes = (3 * n_pad * n_pad
                   + n_pad * (4 * f_pad + 12 * h_pad + 16 * c_pad)
                   + 2 * (f_pad * h_pad + h_pad * c_pad))

    if not force_tiled and fused_bytes <= (_physical_vmem_bytes() * 2) // 5:
        # --- small graph: both layers fused, one kernel launch, h1 in VMEM ---
        probs = pl.pallas_call(
            _gcn_fused_kernel,
            out_shape=jax.ShapeDtypeStruct((n_pad, c_pad), jnp.float32),
            compiler_params=pltpu.CompilerParams(
                vmem_limit_bytes=_vmem_limit(fused_bytes)),
            cost_estimate=pl.CostEstimate(
                flops=int(2 * n_pad * (f_pad * h_pad + n_pad * h_pad
                                       + h_pad * c_pad + n_pad * c_pad)),
                transcendentals=int(n_pad * (c_pad + 1)),
                bytes_accessed=int(n_pad * n_pad + x_pad.size * 4
                                   + w1.size * 2 + w2.size * 2
                                   + b1.size * 4 + b2.size * 4
                                   + n_pad * 4 + n_pad * c_pad * 4)),
        )(adj, x_pad, dis_col, w1, b1, w2, b2)
        return probs[:n, :n_out]

    # --- large graph: project-before-aggregate, row-parallel + K-blocked ---
    tile_i = _pick_tile(n_pad, tile_i)
    tile_k = _pick_tile(n_pad, tile_k)

    p1 = _project_call(x_pad, w1, dis_col, tile_m=tile_i)            # dis*(x@W1)
    h1 = _aggregate_call(adj, p1, dis_col, b1, activation="relu",
                         out_dtype=jnp.bfloat16, tile_i=tile_i, tile_k=tile_k)
    # F.dropout(p=0.5, training=False) == identity in eval mode.
    p2 = _project_call(h1, w2, dis_col, tile_m=tile_i)               # dis*(h1@W2)
    probs = _aggregate_call(adj, p2, dis_col, b2, activation="softmax",
                            out_dtype=jnp.float32, tile_i=tile_i, tile_k=tile_k)
    return probs[:n, :n_out]


# ---------------------------------------------------------------------------
# Pure-JAX f32 reference (same math).
# ---------------------------------------------------------------------------
def gcn_forward_ref(x, edge_index, params):
    n = x.shape[0]
    src, dst = edge_index[0], edge_index[1]
    adj = jnp.zeros((n, n), jnp.float32).at[dst, src].set(1.0)
    adj = jnp.maximum(adj, jnp.eye(n, dtype=jnp.float32))
    deg = adj.sum(axis=1)
    dis = jnp.where(deg > 0.0,
                    1.0 / jnp.sqrt(jnp.where(deg > 0.0, deg, 1.0)), 0.0)
    ahat = dis[:, None] * adj * dis[None, :]
    h1 = jnp.maximum(ahat @ (x @ params["w1"]) + params["b1"], 0.0)
    h2 = ahat @ (h1 @ params["w2"]) + params["b2"]
    return jax.nn.softmax(h2, axis=-1)


def make_params(key, num_node_features, hidden_channels, out_channels):
    ks = jax.random.split(key, 2)

    def glorot(k, shape):
        scale = jnp.sqrt(2.0 / (shape[0] + shape[1]))
        return (scale * jax.random.normal(k, shape)).astype(jnp.float32)

    return {
        "w1": glorot(ks[0], (num_node_features, hidden_channels)),
        "b1": jnp.zeros((1, hidden_channels), jnp.float32),
        "w2": glorot(ks[1], (hidden_channels, out_channels)),
        "b2": jnp.zeros((1, out_channels), jnp.float32),
    }


if __name__ == "__main__":
    def make_edges(num_nodes):
        idx = np.arange(num_nodes)
        src = np.concatenate([idx, (idx + 1) % num_nodes,
                              idx, (idx + 7) % num_nodes])
        dst = np.concatenate([(idx + 1) % num_nodes, idx,
                              (idx + 7) % num_nodes, idx])
        return jnp.asarray(np.stack([src, dst]), dtype=jnp.int32)

    num_node_features = 16
    hidden_channels = 32
    out_channels = 2            # binary classes (elliptic dataset)

    key = jax.random.PRNGKey(0)
    kx1, kx2, kp = jax.random.split(key, 3)
    params = make_params(kp, num_node_features, hidden_channels, out_channels)

    # --- small graph: fused two-layer single-step kernel path ---
    n1 = 64
    x1 = jax.random.normal(kx1, (n1, num_node_features), dtype=jnp.float32)
    e1 = make_edges(n1)
    out1 = jax.block_until_ready(gcn_forward(x1, e1, params))
    ref1 = gcn_forward_ref(x1, e1, params)
    np.testing.assert_allclose(np.asarray(out1), np.asarray(ref1),
                               rtol=2e-2, atol=2e-2)
    assert out1.shape == (n1, out_channels)
    assert bool(jnp.all(jnp.isfinite(out1)))

    # --- larger graph: exercise the tiled row-parallel + K-blocked path ---
    n2 = 300
    x2 = jax.random.normal(kx2, (n2, num_node_features), dtype=jnp.float32)
    e2 = make_edges(n2)
    out2 = jax.block_until_ready(
        gcn_forward(x2, e2, params, tile_i=128, tile_k=128, force_tiled=True))
    ref2 = gcn_forward_ref(x2, e2, params)
    np.testing.assert_allclose(np.asarray(out2), np.asarray(ref2),
                               rtol=2e-2, atol=2e-2)
    assert out2.shape == (n2, out_channels)
    assert bool(jnp.all(jnp.isfinite(out2)))

    print("KERNEL_OK")
</pallas_src>

<mosaic_0001>
module attributes {stable_mosaic.version = 11 : i64} {
  func.func @_gcn_fused_kernel(%arg0: memref<128x128xi8, #tpu.memory_space<vmem>>, %arg1: memref<128x128xf32, #tpu.memory_space<vmem>>, %arg2: memref<128x1xf32, #tpu.memory_space<vmem>>, %arg3: memref<128x128xbf16, #tpu.memory_space<vmem>>, %arg4: memref<1x128xf32, #tpu.memory_space<vmem>>, %arg5: memref<128x128xbf16, #tpu.memory_space<vmem>>, %arg6: memref<1x128xf32, #tpu.memory_space<vmem>>, %arg7: memref<128x128xf32, #tpu.memory_space<vmem>>) attributes {dimension_semantics = [], scalar_prefetch = 0 : i64, scratch_operands = 0 : i64, tpu.core_type = #tpu.core_type<tc>} {
    %c0 = arith.constant 0 : index
    %c0_0 = arith.constant 0 : index
    %0 = vector.load %arg0[%c0, %c0_0] : memref<128x128xi8, #tpu.memory_space<vmem>>, vector<128x128xi8>
    %1 = arith.sitofp %0 : vector<128x128xi8> to vector<128x128xbf16>
    %c0_1 = arith.constant 0 : index
    %c0_2 = arith.constant 0 : index
    %2 = vector.load %arg2[%c0_1, %c0_2] : memref<128x1xf32, #tpu.memory_space<vmem>>, vector<128x1xf32>
    %c0_3 = arith.constant 0 : index
    %c0_4 = arith.constant 0 : index
    %3 = vector.load %arg1[%c0_3, %c0_4] : memref<128x128xf32, #tpu.memory_space<vmem>>, vector<128x128xf32>
    %4 = arith.truncf %3 : vector<128x128xf32> to vector<128x128xbf16>
    %c0_5 = arith.constant 0 : index
    %c0_6 = arith.constant 0 : index
    %5 = vector.load %arg3[%c0_5, %c0_6] : memref<128x128xbf16, #tpu.memory_space<vmem>>, vector<128x128xbf16>
    %cst = arith.constant dense<0.000000e+00> : vector<128x128xf32>
    %6 = tpu.matmul %4, %5, %cst {dimension_numbers = #tpu.dot_dimension_numbers<[1], [0], [0], [1], [0, 0, 1, 1], [], []>} : vector<128x128xbf16>, vector<128x128xbf16>, vector<128x128xf32> -> vector<128x128xf32>
    %7 = vector.broadcast %2 : vector<128x1xf32> to vector<128x128xf32>
    %8 = arith.mulf %7, %6 : vector<128x128xf32>
    %9 = arith.truncf %8 : vector<128x128xf32> to vector<128x128xbf16>
    %cst_7 = arith.constant dense<0.000000e+00> : vector<128x128xf32>
    %10 = tpu.matmul %1, %9, %cst_7 {dimension_numbers = #tpu.dot_dimension_numbers<[1], [0], [0], [1], [0, 0, 1, 1], [], []>} : vector<128x128xbf16>, vector<128x128xbf16>, vector<128x128xf32> -> vector<128x128xf32>
    %11 = vector.broadcast %2 : vector<128x1xf32> to vector<128x128xf32>
    %12 = arith.mulf %11, %10 : vector<128x128xf32>
    %c0_8 = arith.constant 0 : index
    %c0_9 = arith.constant 0 : index
    %13 = vector.load %arg4[%c0_8, %c0_9] : memref<1x128xf32, #tpu.memory_space<vmem>>, vector<1x128xf32>
    %14 = vector.broadcast %13 : vector<1x128xf32> to vector<128x128xf32>
    %15 = arith.addf %12, %14 : vector<128x128xf32>
    %cst_10 = arith.constant 0.000000e+00 : f32
    %16 = vector.broadcast %cst_10 : f32 to vector<128x128xf32>
    %17 = arith.maximumf %15, %16 : vector<128x128xf32>
    %18 = arith.truncf %17 : vector<128x128xf32> to vector<128x128xbf16>
    %c0_11 = arith.constant 0 : index
    %c0_12 = arith.constant 0 : index
    %19 = vector.load %arg5[%c0_11, %c0_12] : memref<128x128xbf16, #tpu.memory_space<vmem>>, vector<128x128xbf16>
    %cst_13 = arith.constant dense<0.000000e+00> : vector<128x128xf32>
    %20 = tpu.matmul %18, %19, %cst_13 {dimension_numbers = #tpu.dot_dimension_numbers<[1], [0], [0], [1], [0, 0, 1, 1], [], []>} : vector<128x128xbf16>, vector<128x128xbf16>, vector<128x128xf32> -> vector<128x128xf32>
    %21 = vector.broadcast %2 : vector<128x1xf32> to vector<128x128xf32>
    %22 = arith.mulf %21, %20 : vector<128x128xf32>
    %23 = arith.truncf %22 : vector<128x128xf32> to vector<128x128xbf16>
    %cst_14 = arith.constant dense<0.000000e+00> : vector<128x128xf32>
    %24 = tpu.matmul %1, %23, %cst_14 {dimension_numbers = #tpu.dot_dimension_numbers<[1], [0], [0], [1], [0, 0, 1, 1], [], []>} : vector<128x128xbf16>, vector<128x128xbf16>, vector<128x128xf32> -> vector<128x128xf32>
    %25 = vector.broadcast %2 : vector<128x1xf32> to vector<128x128xf32>
    %26 = arith.mulf %25, %24 : vector<128x128xf32>
    %c0_15 = arith.constant 0 : index
    %c0_16 = arith.constant 0 : index
    %27 = vector.load %arg6[%c0_15, %c0_16] : memref<1x128xf32, #tpu.memory_space<vmem>>, vector<1x128xf32>
    %28 = vector.broadcast %27 : vector<1x128xf32> to vector<128x128xf32>
    %29 = arith.addf %26, %28 : vector<128x128xf32>
    %cst_17 = arith.constant dense<0xFF800000> : vector<128xf32>
    %30 = vector.multi_reduction <maximumf>, %29, %cst_17 [1] : vector<128x128xf32> to vector<128xf32>
    %31 = vector.shape_cast %30 : vector<128xf32> to vector<128x1xf32>
    %32 = vector.broadcast %31 : vector<128x1xf32> to vector<128x128xf32>
    %33 = arith.subf %29, %32 : vector<128x128xf32>
    %34 = math.exp %33 : vector<128x128xf32>
    %cst_18 = arith.constant dense<0.000000e+00> : vector<128xf32>
    %35 = vector.multi_reduction <add>, %34, %cst_18 [1] : vector<128x128xf32> to vector<128xf32>
    %36 = vector.shape_cast %35 : vector<128xf32> to vector<128x1xf32>
    %37 = tpu.reciprocal %36 {approx = true} : vector<128x1xf32> -> vector<128x1xf32>
    %38 = vector.broadcast %37 : vector<128x1xf32> to vector<128x128xf32>
    %39 = arith.mulf %34, %38 : vector<128x128xf32>
    %c0_19 = arith.constant 0 : index
    %c0_20 = arith.constant 0 : index
    %40 = vector.load %arg7[%c0_19, %c0_20] : memref<128x128xf32, #tpu.memory_space<vmem>>, vector<128x128xf32>
    tpu.vector_store %arg7[%c0_19, %c0_20], %39 {strides = array<i32>} : memref<128x128xf32, #tpu.memory_space<vmem>>, vector<128x128xf32>,
    return
  }
}

</mosaic_0001>

<llo_original>
// kernel: tpu_custom_call.1
$region0: #{tpu_custom_call.1}
  #allocation0 [shape = 'u32[]', space=smem, size = 0x4, offset = 0x4, fixed_abs, tag = 'smem constant byte address 0x4 - core index']
  #allocation1 [shape = 'u32[144,128]{1,0:T(1,128)}', space=vmem, size = 0x12000, scoped, tag = 'internal scratch']
  %s0 = inlined_call_operand.hbm [shape: s8[128,128], index: 0, kind: input, shape index: {}]
  %s1 = inlined_call_operand.vmem [shape: f32[128,128], index: 1, kind: input, shape index: {}]
  %s2 = inlined_call_operand.vmem [shape: f32[128,1], index: 2, kind: input, shape index: {}]
  %s3 = inlined_call_operand.hbm [shape: bf16[128,128], index: 3, kind: input, shape index: {}]
  %s4 = inlined_call_operand.vmem [shape: f32[1,128], index: 4, kind: input, shape index: {}]
  %s5 = inlined_call_operand.hbm [shape: bf16[128,128], index: 5, kind: input, shape index: {}]
  %s6 = inlined_call_operand.vmem [shape: f32[1,128], index: 6, kind: input, shape index: {}]
  %s7 = inlined_call_operand.hbm [shape: f32[128,128], index: 7, kind: output, shape index: {}]
  %s8 = sld [smem:[#allocation0]]
  $region50: #{tpu_custom_call.1} parent=0
    _
  %s10 = ssub.s32 1, %s8
  %s11 = scalar_select 0, %s10, %s8
  $region1: #{tpu_custom_call.1} parent=0
    #allocation2 [shape = 'u8[16384]{0}', space=vmem, size = 0x4000, scoped, tag = 'input window, operand 0, single buffered']
    #allocation3 [shape = 's32[1]{0}', space=sflag, size = 0x4, scoped, tag = 'scoped memory for tpu_custom_call.1']
    #allocation4 [shape = 's32[1]{0}', space=sflag, size = 0x4, scoped, tag = 'scoped memory for tpu_custom_call.1']
    #allocation5 [shape = 'u8[32768]{0}', space=vmem, size = 0x8000, scoped, tag = 'input window, operand 3, single buffered']
    #allocation6 [shape = 's32[1]{0}', space=sflag, size = 0x4, scoped, tag = 'scoped memory for tpu_custom_call.1']
    #allocation7 [shape = 'u8[32768]{0}', space=vmem, size = 0x8000, scoped, tag = 'input window, operand 5, single buffered']
    #allocation8 [shape = 'u8[65536]{0}', space=vmem, size = 0x10000, scoped, tag = 'output window, operand 0, single buffered']
    %12 = vsyncpa [#allocation3], 0
    %13 = vsyncpa [#allocation6], 0
    %14 = vsyncpa [#allocation4], 0
    // Predicated region
    $region2: #{tpu_custom_call.1} parent=1 // pred_check
      _
    $region3: #{tpu_custom_call.1} parent=1 // pred_check_branch
      %16 = sbr.rel (0) target = $region5
    $region4: #{tpu_custom_call.1} parent=1 // pred_region
      %s18 = ssub.s32 512, 512
      %19 = vsyncadd [#allocation3], %s18
      %s20 = sshll.u32 [#allocation2], 4
      %s21 = int_to_ptr.vmem [resolvable:$true] %s20
      %26 = dma.hbm_to_vmem [thread:$0]  %s0, 512, %s21, [#allocation3], 128, 128, 8
    $region5: #{tpu_custom_call.1} parent=1 // pred_fallthru
      _
    // Predicated region
    $region6: #{tpu_custom_call.1} parent=1 // pred_check
      _
    $region7: #{tpu_custom_call.1} parent=1 // pred_check_branch
      %28 = sbr.rel (0) target = $region9
    $region8: #{tpu_custom_call.1} parent=1 // pred_region
      _
    $region9: #{tpu_custom_call.1} parent=1 // pred_fallthru
      _
    // Predicated region
    $region10: #{tpu_custom_call.1} parent=1 // pred_check
      _
    $region11: #{tpu_custom_call.1} parent=1 // pred_check_branch
      %30 = sbr.rel (0) target = $region13
    $region12: #{tpu_custom_call.1} parent=1 // pred_region
      _
    $region13: #{tpu_custom_call.1} parent=1 // pred_fallthru
      _
    // Predicated region
    $region14: #{tpu_custom_call.1} parent=1 // pred_check
      _
    $region15: #{tpu_custom_call.1} parent=1 // pred_check_branch
      %32 = sbr.rel (0) target = $region17
    $region16: #{tpu_custom_call.1} parent=1 // pred_region
      %s34 = ssub.s32 1024, 1024
      %35 = vsyncadd [#allocation6], %s34
      %s36 = sshll.u32 [#allocation5], 4
      %s37 = int_to_ptr.vmem [resolvable:$true] %s36
      %42 = dma.hbm_to_vmem [thread:$0]  %s3, 1024, %s37, [#allocation6], 64, 64, 4
    $region17: #{tpu_custom_call.1} parent=1 // pred_fallthru
      _
    // Predicated region
    $region18: #{tpu_custom_call.1} parent=1 // pred_check
      _
    $region19: #{tpu_custom_call.1} parent=1 // pred_check_branch
      %44 = sbr.rel (0) target = $region21
    $region20: #{tpu_custom_call.1} parent=1 // pred_region
      _
    $region21: #{tpu_custom_call.1} parent=1 // pred_fallthru
      _
    // Predicated region
    $region22: #{tpu_custom_call.1} parent=1 // pred_check
      _
    $region23: #{tpu_custom_call.1} parent=1 // pred_check_branch
      %46 = sbr.rel (0) target = $region25
    $region24: #{tpu_custom_call.1} parent=1 // pred_region
      %s48 = ssub.s32 1024, 1024
      %49 = vsyncadd [#allocation6], %s48
      %s50 = sshll.u32 [#allocation7], 4
      %s51 = int_to_ptr.vmem [resolvable:$true] %s50
      %56 = dma.hbm_to_vmem [thread:$0]  %s5, 1024, %s51, [#allocation6], 64, 64, 4
    $region25: #{tpu_custom_call.1} parent=1 // pred_fallthru
      _
    // Predicated region
    $region26: #{tpu_custom_call.1} parent=1 // pred_check
      _
    $region27: #{tpu_custom_call.1} parent=1 // pred_check_branch
      %58 = sbr.rel (0) target = $region29
    $region28: #{tpu_custom_call.1} parent=1 // pred_region
      _
    $region29: #{tpu_custom_call.1} parent=1 // pred_fallthru
      _
    // Predicated region
    $region30: #{tpu_custom_call.1} parent=1 // pred_check
      _
    $region31: #{tpu_custom_call.1} parent=1 // pred_check_branch
      %60 = sbr.rel (0) target = $region33
    $region32: #{tpu_custom_call.1} parent=1 // pred_region
      %61 = dma.done [#allocation3], 512
    $region33: #{tpu_custom_call.1} parent=1 // pred_fallthru
      _
    // Predicated region
    $region34: #{tpu_custom_call.1} parent=1 // pred_check
      _
    $region35: #{tpu_custom_call.1} parent=1 // pred_check_branch
      %63 = sbr.rel (0) target = $region37
    $region36: #{tpu_custom_call.1} parent=1 // pred_region
      %64 = dma.done [#allocation6], 1024
    $region37: #{tpu_custom_call.1} parent=1 // pred_fallthru
      _
    // Predicated region
    $region38: #{tpu_custom_call.1} parent=1 // pred_check
      _
    $region39: #{tpu_custom_call.1} parent=1 // pred_check_branch
      %66 = sbr.rel (0) target = $region41
    $region40: #{tpu_custom_call.1} parent=1 // pred_region
      %67 = dma.done [#allocation6], 1024
    $region41: #{tpu_custom_call.1} parent=1 // pred_fallthru
      _
    %v69 = vld [vmem:[#allocation2] sm:$0xff]
    %v70 = vld [vmem:[#allocation2 + $0x8] sm:$0xff]
    %v71 = vld [vmem:[#allocation2 + $0x10] sm:$0xff]
    %v72 = vld [vmem:[#allocation2 + $0x18] sm:$0xff]
    %v73 = vunpack.c.l.s8.bf16 %v69
    %v74 = vunpack.c.h.s8.bf16 %v69
    %v75 = vunpack.c.l.s8.bf16 %v70
    %v76 = vunpack.c.h.s8.bf16 %v70
    %v77 = vunpack.c.l.s8.bf16 %v71
    %v78 = vunpack.c.h.s8.bf16 %v71
    %v79 = vunpack.c.l.s8.bf16 %v72
    %v80 = vunpack.c.h.s8.bf16 %v72
    %v81 = vld [vmem:[%s2] sm:$0xff]
    %v82 = vld [vmem:[%s2 + $0x8] sm:$0xff]
    %v83 = vld [vmem:[%s2 + $0x10] sm:$0xff]
    %v84 = vld [vmem:[%s2 + $0x18] sm:$0xff]
    %v85 = vld [vmem:[%s2 + $0x20] sm:$0xff]
    %v86 = vld [vmem:[%s2 + $0x28] sm:$0xff]
    %v87 = vld [vmem:[%s2 + $0x30] sm:$0xff]
    %v88 = vld [vmem:[%s2 + $0x38] sm:$0xff]
    %v89 = vld [vmem:[%s2 + $0x40] sm:$0xff]
    %v90 = vld [vmem:[%s2 + $0x48] sm:$0xff]
    %v91 = vld [vmem:[%s2 + $0x50] sm:$0xff]
    %v92 = vld [vmem:[%s2 + $0x58] sm:$0xff]
    %v93 = vld [vmem:[%s2 + $0x60] sm:$0xff]
    %v94 = vld [vmem:[%s2 + $0x68] sm:$0xff]
    %v95 = vld [vmem:[%s2 + $0x70] sm:$0xff]
    %v96 = vld [vmem:[%s2 + $0x78] sm:$0xff]
    %v97 = vld [vmem:[%s1] sm:$0xff]
    %v98 = vld [vmem:[%s1 + $0x8] sm:$0xff]
    %v99 = vld [vmem:[%s1 + $0x10] sm:$0xff]
    %v100 = vld [vmem:[%s1 + $0x18] sm:$0xff]
    %v101 = vld [vmem:[%s1 + $0x20] sm:$0xff]
    %v102 = vld [vmem:[%s1 + $0x28] sm:$0xff]
    %v103 = vld [vmem:[%s1 + $0x30] sm:$0xff]
    %v104 = vld [vmem:[%s1 + $0x38] sm:$0xff]
    %v105 = vld [vmem:[%s1 + $0x40] sm:$0xff]
    %v106 = vld [vmem:[%s1 + $0x48] sm:$0xff]
    %v107 = vld [vmem:[%s1 + $0x50] sm:$0xff]
    %v108 = vld [vmem:[%s1 + $0x58] sm:$0xff]
    %v109 = vld [vmem:[%s1 + $0x60] sm:$0xff]
    %v110 = vld [vmem:[%s1 + $0x68] sm:$0xff]
    %v111 = vld [vmem:[%s1 + $0x70] sm:$0xff]
    %v112 = vld [vmem:[%s1 + $0x78] sm:$0xff]
    %v113 = vpack.c.bf16 %v98, %v97
    %v114 = vpack.c.bf16 %v100, %v99
    %v115 = vpack.c.bf16 %v102, %v101
    %v116 = vpack.c.bf16 %v104, %v103
    %v117 = vpack.c.bf16 %v106, %v105
    %v118 = vpack.c.bf16 %v108, %v107
    %v119 = vpack.c.bf16 %v110, %v109
    %v120 = vpack.c.bf16 %v112, %v111
    %v121 = vld [vmem:[#allocation5] sm:$0xf]
    %v122 = vld [vmem:[#allocation5 + $0x4] sm:$0xf]
    %v123 = vld [vmem:[#allocation5 + $0x8] sm:$0xf]
    %v124 = vld [vmem:[#allocation5 + $0xc] sm:$0xf]
    %v125 = vld [vmem:[#allocation5 + $0x10] sm:$0xf]
    %v126 = vld [vmem:[#allocation5 + $0x14] sm:$0xf]
    %v127 = vld [vmem:[#allocation5 + $0x18] sm:$0xf]
    %v128 = vld [vmem:[#allocation5 + $0x1c] sm:$0xf]
    %v129 = vld [vmem:[#allocation5 + $0x20] sm:$0xf]
    %v130 = vld [vmem:[#allocation5 + $0x24] sm:$0xf]
    %v131 = vld [vmem:[#allocation5 + $0x28] sm:$0xf]
    %v132 = vld [vmem:[#allocation5 + $0x2c] sm:$0xf]
    %v133 = vld [vmem:[#allocation5 + $0x30] sm:$0xf]
    %v134 = vld [vmem:[#allocation5 + $0x34] sm:$0xf]
    %v135 = vld [vmem:[#allocation5 + $0x38] sm:$0xf]
    %v136 = vld [vmem:[#allocation5 + $0x3c] sm:$0xf]
    %v153 = vunpack.c.l.b16 %v121
    %v154 = vunpack.c.l.b16 %v122
    %v155 = vunpack.c.l.b16 %v123
    %v156 = vunpack.c.l.b16 %v124
    %v157 = vunpack.c.l.b16 %v125
    %v158 = vunpack.c.l.b16 %v126
    %v159 = vunpack.c.l.b16 %v127
    %v160 = vunpack.c.l.b16 %v128
    %v161 = vunpack.c.l.b16 %v129
    %v162 = vunpack.c.l.b16 %v130
    %v163 = vunpack.c.l.b16 %v131
    %v164 = vunpack.c.l.b16 %v132
    %v165 = vunpack.c.l.b16 %v133
    %v166 = vunpack.c.l.b16 %v134
    %v167 = vunpack.c.l.b16 %v135
    %v168 = vunpack.c.l.b16 %v136
    %v169 = vpack.c.b16 %v154, %v153
    %v170 = vpack.c.b16 %v156, %v155
    %v171 = vpack.c.b16 %v158, %v157
    %v172 = vpack.c.b16 %v160, %v159
    %v173 = vpack.c.b16 %v162, %v161
    %v174 = vpack.c.b16 %v164, %v163
    %v175 = vpack.c.b16 %v166, %v165
    %v176 = vpack.c.b16 %v168, %v167
    %185 = vmatprep.subr.bf16.mxu0 0
    %186 = vmatpush1.bf16.msra.mxu0 %v169
    %187 = vmatprep.subr.bf16.mxu0 0
    %188 = vmatpush1.bf16.msra.mxu0 %v170
    %189 = vmatprep.subr.bf16.mxu0 0
    %190 = vmatpush1.bf16.msra.mxu0 %v171
    %191 = vmatprep.subr.bf16.mxu0 0
    %192 = vmatpush1.bf16.msra.mxu0 %v172
    %193 = vmatprep.subr.bf16.mxu0 0
    %194 = vmatpush1.bf16.msra.mxu0 %v173
    %195 = vmatprep.subr.bf16.mxu0 0
    %196 = vmatpush1.bf16.msra.mxu0 %v174
    %197 = vmatprep.subr.bf16.mxu0 0
    %198 = vmatpush1.bf16.msra.mxu0 %v175
    %199 = vmatprep.subr.bf16.mxu0 0
    %200 = vmatpush1.bf16.msra.mxu0 %v176
    %201 = vmatprep.subr.bf16.mxu0 0
    %202 = vmatpush1.bf16.msra.mxu0 0
    %203 = vmatprep.subr.bf16.mxu0 0
    %204 = vmatpush1.bf16.msra.mxu0 0
    %205 = vmatprep.subr.bf16.mxu0 0
    %206 = vmatpush1.bf16.msra.mxu0 0
    %207 = vmatprep.subr.bf16.mxu0 0
    %208 = vmatpush1.bf16.msra.mxu0 0
    %209 = vmatprep.subr.bf16.mxu0 0
    %210 = vmatpush1.bf16.msra.mxu0 0
    %211 = vmatprep.subr.bf16.mxu0 0
    %212 = vmatpush1.bf16.msra.mxu0 0
    %213 = vmatprep.subr.bf16.mxu0 0
    %214 = vmatpush1.bf16.msra.mxu0 0
    %215 = vmatprep.subr.bf16.mxu0 0
    %216 = vmatpush1.bf16.msra.mxu0 0
    %217 = vmatprep.mubr.bf16.mxu0 0
    %218 = vmatmul.mubr.bf16.gmra.mrb[0].mxu0 %v113
    %v219 = vpop.f32.mrb[0].mxu0
    %v220 = vadd.f32 0.0, %v219
    %v221 = vpop.f32.mrb[0].mxu0
    %v222 = vpop.f32.mrb[0].mxu0
    %v223 = vadd.f32 0.0, %v222
    %v224 = vpop.f32.mrb[0].mxu0
    %225 = vmatprep.mubr.bf16.mxu0 0
    %226 = vmatmul.mubr.bf16.gmra.mrb[0].mxu0 %v114
    %v227 = vpop.f32.mrb[0].mxu0
    %v228 = vadd.f32 0.0, %v227
    %v229 = vpop.f32.mrb[0].mxu0
    %v230 = vpop.f32.mrb[0].mxu0
    %v231 = vadd.f32 0.0, %v230
    %v232 = vpop.f32.mrb[0].mxu0
    %233 = vmatprep.mubr.bf16.mxu0 0
    %234 = vmatmul.mubr.bf16.gmra.mrb[0].mxu0 %v115
    %v235 = vpop.f32.mrb[0].mxu0
    %v236 = vadd.f32 0.0, %v235
    %v237 = vpop.f32.mrb[0].mxu0
    %v238 = vpop.f32.mrb[0].mxu0
    %v239 = vadd.f32 0.0, %v238
    %v240 = vpop.f32.mrb[0].mxu0
    %241 = vmatprep.mubr.bf16.mxu0 0
    %242 = vmatmul.mubr.bf16.gmra.mrb[0].mxu0 %v116
    %v243 = vpop.f32.mrb[0].mxu0
    %v244 = vadd.f32 0.0, %v243
    %v245 = vpop.f32.mrb[0].mxu0
    %v246 = vpop.f32.mrb[0].mxu0
    %v247 = vadd.f32 0.0, %v246
    %v248 = vpop.f32.mrb[0].mxu0
    %249 = vmatprep.mubr.bf16.mxu0 0
    %250 = vmatmul.mubr.bf16.gmra.mrb[0].mxu0 %v117
    %v251 = vpop.f32.mrb[0].mxu0
    %v252 = vadd.f32 0.0, %v251
    %v253 = vpop.f32.mrb[0].mxu0
    %v254 = vpop.f32.mrb[0].mxu0
    %v255 = vadd.f32 0.0, %v254
    %v256 = vpop.f32.mrb[0].mxu0
    %257 = vmatprep.mubr.bf16.mxu0 0
    %258 = vmatmul.mubr.bf16.gmra.mrb[0].mxu0 %v118
    %v259 = vpop.f32.mrb[0].mxu0
    %v260 = vadd.f32 0.0, %v259
    %v261 = vpop.f32.mrb[0].mxu0
    %v262 = vpop.f32.mrb[0].mxu0
    %v263 = vadd.f32 0.0, %v262
    %v264 = vpop.f32.mrb[0].mxu0
    %265 = vmatprep.mubr.bf16.mxu0 0
    %266 = vmatmul.mubr.bf16.gmra.mrb[0].mxu0 %v119
    %v267 = vpop.f32.mrb[0].mxu0
    %v268 = vadd.f32 0.0, %v267
    %v269 = vpop.f32.mrb[0].mxu0
    %v270 = vpop.f32.mrb[0].mxu0
    %v271 = vadd.f32 0.0, %v270
    %v272 = vpop.f32.mrb[0].mxu0
    %273 = vmatprep.mubr.bf16.mxu0 0
    %274 = vmatmul.mubr.bf16.gmra.mrb[0].mxu0 %v120
    %v275 = vpop.f32.mrb[0].mxu0
    %v276 = vadd.f32 0.0, %v275
    %v277 = vpop.f32.mrb[0].mxu0
    %v278 = vpop.f32.mrb[0].mxu0
    %v279 = vadd.f32 0.0, %v278
    %v280 = vpop.f32.mrb[0].mxu0
    %281 = vdwg.mxu0
    %283 = vset.pattern.permute.xlu0 0
    %284 = vperm.xlu0 %283, %v81
    %v285 = vpop.permute.xlu0 %284
    %288 = vset.pattern.permute.xlu0 0
    %289 = vperm.xlu0 %288, %v82
    %v290 = vpop.permute.xlu0 %289
    %293 = vset.pattern.permute.xlu0 0
    %294 = vperm.xlu0 %293, %v83
    %v295 = vpop.permute.xlu0 %294
    %298 = vset.pattern.permute.xlu0 0
    %299 = vperm.xlu0 %298, %v84
    %v300 = vpop.permute.xlu0 %299
    %303 = vset.pattern.permute.xlu0 0
    %304 = vperm.xlu0 %303, %v85
    %v305 = vpop.permute.xlu0 %304
    %308 = vset.pattern.permute.xlu0 0
    %309 = vperm.xlu0 %308, %v86
    %v310 = vpop.permute.xlu0 %309
    %313 = vset.pattern.permute.xlu0 0
    %314 = vperm.xlu0 %313, %v87
    %v315 = vpop.permute.xlu0 %314
    %318 = vset.pattern.permute.xlu0 0
    %319 = vperm.xlu0 %318, %v88
    %v320 = vpop.permute.xlu0 %319
    %323 = vset.pattern.permute.xlu0 0
    %324 = vperm.xlu0 %323, %v89
    %v325 = vpop.permute.xlu0 %324
    %328 = vset.pattern.permute.xlu0 0
    %329 = vperm.xlu0 %328, %v90
    %v330 = vpop.permute.xlu0 %329
    %333 = vset.pattern.permute.xlu0 0
    %334 = vperm.xlu0 %333, %v91
    %v335 = vpop.permute.xlu0 %334
    %338 = vset.pattern.permute.xlu0 0
    %339 = vperm.xlu0 %338, %v92
    %v340 = vpop.permute.xlu0 %339
    %343 = vset.pattern.permute.xlu0 0
    %344 = vperm.xlu0 %343, %v93
    %v345 = vpop.permute.xlu0 %344
    %348 = vset.pattern.permute.xlu0 0
    %349 = vperm.xlu0 %348, %v94
    %v350 = vpop.permute.xlu0 %349
    %353 = vset.pattern.permute.xlu0 0
    %354 = vperm.xlu0 %353, %v95
    %v355 = vpop.permute.xlu0 %354
    %358 = vset.pattern.permute.xlu0 0
    %359 = vperm.xlu0 %358, %v96
    %v360 = vpop.permute.xlu0 %359
    %v362 = vmul.f32 %v285, %v220
    %v363 = vmul.f32 %v290, %v223
    %v364 = vmul.f32 %v295, %v228
    %v365 = vmul.f32 %v300, %v231
    %v366 = vmul.f32 %v305, %v236
    %v367 = vmul.f32 %v310, %v239
    %v368 = vmul.f32 %v315, %v244
    %v369 = vmul.f32 %v320, %v247
    %v370 = vmul.f32 %v325, %v252
    %v371 = vmul.f32 %v330, %v255
    %v372 = vmul.f32 %v335, %v260
    %v373 = vmul.f32 %v340, %v263
    %v374 = vmul.f32 %v345, %v268
    %v375 = vmul.f32 %v350, %v271
    %v376 = vmul.f32 %v355, %v276
    %v377 = vmul.f32 %v360, %v279
    %v378 = vpack.c.bf16 %v363, %v362
    %v379 = vpack.c.bf16 %v365, %v364
    %v380 = vpack.c.bf16 %v367, %v366
    %v381 = vpack.c.bf16 %v369, %v368
    %v382 = vpack.c.bf16 %v371, %v370
    %v383 = vpack.c.bf16 %v373, %v372
    %v384 = vpack.c.bf16 %v375, %v374
    %v385 = vpack.c.bf16 %v377, %v376
    %386 = vmatprep.subr.bf16.mxu0 0
    %387 = vmatpush1.bf16.msra.mxu0 %v378
    %388 = vmatprep.subr.bf16.mxu0 0
    %389 = vmatpush1.bf16.msra.mxu0 %v379
    %390 = vmatprep.subr.bf16.mxu0 0
    %391 = vmatpush1.bf16.msra.mxu0 %v380
    %392 = vmatprep.subr.bf16.mxu0 0
    %393 = vmatpush1.bf16.msra.mxu0 %v381
    %394 = vmatprep.subr.bf16.mxu0 0
    %395 = vmatpush1.bf16.msra.mxu0 %v382
    %396 = vmatprep.subr.bf16.mxu0 0
    %397 = vmatpush1.bf16.msra.mxu0 %v383
    %398 = vmatprep.subr.bf16.mxu0 0
    %399 = vmatpush1.bf16.msra.mxu0 %v384
    %400 = vmatprep.subr.bf16.mxu0 0
    %401 = vmatpush1.bf16.msra.mxu0 %v385
    %402 = vmatprep.subr.bf16.mxu0 0
    %403 = vmatpush1.bf16.msra.mxu0 0
    %404 = vmatprep.subr.bf16.mxu0 0
    %405 = vmatpush1.bf16.msra.mxu0 0
    %406 = vmatprep.subr.bf16.mxu0 0
    %407 = vmatpush1.bf16.msra.mxu0 0
    %408 = vmatprep.subr.bf16.mxu0 0
    %409 = vmatpush1.bf16.msra.mxu0 0
    %410 = vmatprep.subr.bf16.mxu0 0
    %411 = vmatpush1.bf16.msra.mxu0 0
    %412 = vmatprep.subr.bf16.mxu0 0
    %413 = vmatpush1.bf16.msra.mxu0 0
    %414 = vmatprep.subr.bf16.mxu0 0
    %415 = vmatpush1.bf16.msra.mxu0 0
    %416 = vmatprep.subr.bf16.mxu0 0
    %417 = vmatpush1.bf16.msra.mxu0 0
    %418 = vmatprep.mubr.bf16.mxu0 0
    %419 = vmatmul.mubr.bf16.gmra.mrb[0].mxu0 %v73
    %v420 = vpop.f32.mrb[0].mxu0
    %v421 = vadd.f32 0.0, %v420
    %v422 = vpop.f32.mrb[0].mxu0
    %v423 = vpop.f32.mrb[0].mxu0
    %v424 = vadd.f32 0.0, %v423
    %v425 = vpop.f32.mrb[0].mxu0
    %426 = vmatprep.mubr.bf16.mxu0 0
    %427 = vmatmul.mubr.bf16.gmra.mrb[0].mxu0 %v74
    %v428 = vpop.f32.mrb[0].mxu0
    %v429 = vadd.f32 0.0, %v428
    %v430 = vpop.f32.mrb[0].mxu0
    %v431 = vpop.f32.mrb[0].mxu0
    %v432 = vadd.f32 0.0, %v431
    %v433 = vpop.f32.mrb[0].mxu0
    %434 = vmatprep.mubr.bf16.mxu0 0
    %435 = vmatmul.mubr.bf16.gmra.mrb[0].mxu0 %v75
    %v436 = vpop.f32.mrb[0].mxu0
    %v437 = vadd.f32 0.0, %v436
    %v438 = vpop.f32.mrb[0].mxu0
    %v439 = vpop.f32.mrb[0].mxu0
    %v440 = vadd.f32 0.0, %v439
    %v441 = vpop.f32.mrb[0].mxu0
    %442 = vmatprep.mubr.bf16.mxu0 0
    %443 = vmatmul.mubr.bf16.gmra.mrb[0].mxu0 %v76
    %v444 = vpop.f32.mrb[0].mxu0
    %v445 = vadd.f32 0.0, %v444
    %v446 = vpop.f32.mrb[0].mxu0
    %v447 = vpop.f32.mrb[0].mxu0
    %v448 = vadd.f32 0.0, %v447
    %v449 = vpop.f32.mrb[0].mxu0
    %450 = vmatprep.mubr.bf16.mxu0 0
    %451 = vmatmul.mubr.bf16.gmra.mrb[0].mxu0 %v77
    %v452 = vpop.f32.mrb[0].mxu0
    %v453 = vadd.f32 0.0, %v452
    %v454 = vpop.f32.mrb[0].mxu0
    %v455 = vpop.f32.mrb[0].mxu0
    %v456 = vadd.f32 0.0, %v455
    %v457 = vpop.f32.mrb[0].mxu0
    %458 = vmatprep.mubr.bf16.mxu0 0
    %459 = vmatmul.mubr.bf16.gmra.mrb[0].mxu0 %v78
    %v460 = vpop.f32.mrb[0].mxu0
    %v461 = vadd.f32 0.0, %v460
    %v462 = vpop.f32.mrb[0].mxu0
    %v463 = vpop.f32.mrb[0].mxu0
    %v464 = vadd.f32 0.0, %v463
    %v465 = vpop.f32.mrb[0].mxu0
    %466 = vmatprep.mubr.bf16.mxu0 0
    %467 = vmatmul.mubr.bf16.gmra.mrb[0].mxu0 %v79
    %v468 = vpop.f32.mrb[0].mxu0
    %v469 = vadd.f32 0.0, %v468
    %v470 = vpop.f32.mrb[0].mxu0
    %v471 = vpop.f32.mrb[0].mxu0
    %v472 = vadd.f32 0.0, %v471
    %v473 = vpop.f32.mrb[0].mxu0
    %474 = vmatprep.mubr.bf16.mxu0 0
    %475 = vmatmul.mubr.bf16.gmra.mrb[0].mxu0 %v80
    %v476 = vpop.f32.mrb[0].mxu0
    %v477 = vadd.f32 0.0, %v476
    %v478 = vpop.f32.mrb[0].mxu0
    %v479 = vpop.f32.mrb[0].mxu0
    %v480 = vadd.f32 0.0, %v479
    %v481 = vpop.f32.mrb[0].mxu0
    %482 = vdwg.mxu0
    %v483 = vmul.f32 %v285, %v421
    %v484 = vmul.f32 %v290, %v424
    %v485 = vmul.f32 %v295, %v429
    %v486 = vmul.f32 %v300, %v432
    %v487 = vmul.f32 %v305, %v437
    %v488 = vmul.f32 %v310, %v440
    %v489 = vmul.f32 %v315, %v445
    %v490 = vmul.f32 %v320, %v448
    %v491 = vmul.f32 %v325, %v453
    %v492 = vmul.f32 %v330, %v456
    %v493 = vmul.f32 %v335, %v461
    %v494 = vmul.f32 %v340, %v464
    %v495 = vmul.f32 %v345, %v469
    %v496 = vmul.f32 %v350, %v472
    %v497 = vmul.f32 %v355, %v477
    %v498 = vmul.f32 %v360, %v480
    %v499 = vld [vmem:[%s4] sm:$0x1]
    %v501 = vlaneseq
    %v502 = vshrl.u32 %v501, 7
    %v503 = vsub.s32 0, %v502
    %v504 = vrot.slane %v499, %v503
    %v506 = vadd.f32 %v483, %v504
    %v507 = vadd.f32 %v484, %v504
    %v508 = vadd.f32 %v485, %v504
    %v509 = vadd.f32 %v486, %v504
    %v510 = vadd.f32 %v487, %v504
    %v511 = vadd.f32 %v488, %v504
    %v512 = vadd.f32 %v489, %v504
    %v513 = vadd.f32 %v490, %v504
    %v514 = vadd.f32 %v491, %v504
    %v515 = vadd.f32 %v492, %v504
    %v516 = vadd.f32 %v493, %v504
    %v517 = vadd.f32 %v494, %v504
    %v518 = vadd.f32 %v495, %v504
    %v519 = vadd.f32 %v496, %v504
    %v520 = vadd.f32 %v497, %v504
    %v521 = vadd.f32 %v498, %v504
    %v522 = vmax.f32 %v506, 0.0
    %v523 = vmax.f32 %v507, 0.0
    %v524 = vmax.f32 %v508, 0.0
    %v525 = vmax.f32 %v509, 0.0
    %v526 = vmax.f32 %v510, 0.0
    %v527 = vmax.f32 %v511, 0.0
    %v528 = vmax.f32 %v512, 0.0
    %v529 = vmax.f32 %v513, 0.0
    %v530 = vmax.f32 %v514, 0.0
    %v531 = vmax.f32 %v515, 0.0
    %v532 = vmax.f32 %v516, 0.0
    %v533 = vmax.f32 %v517, 0.0
    %v534 = vmax.f32 %v518, 0.0
    %v535 = vmax.f32 %v519, 0.0
    %v536 = vmax.f32 %v520, 0.0
    %v537 = vmax.f32 %v521, 0.0
    %v538 = vpack.c.bf16 %v523, %v522
    %v539 = vpack.c.bf16 %v525, %v524
    %v540 = vpack.c.bf16 %v527, %v526
    %v541 = vpack.c.bf16 %v529, %v528
    %v542 = vpack.c.bf16 %v531, %v530
    %v543 = vpack.c.bf16 %v533, %v532
    %v544 = vpack.c.bf16 %v535, %v534
    %v545 = vpack.c.bf16 %v537, %v536
    %v546 = vld [vmem:[#allocation7] sm:$0xf]
    %v547 = vld [vmem:[#allocation7 + $0x4] sm:$0xf]
    %v548 = vld [vmem:[#allocation7 + $0x8] sm:$0xf]
    %v549 = vld [vmem:[#allocation7 + $0xc] sm:$0xf]
    %v550 = vld [vmem:[#allocation7 + $0x10] sm:$0xf]
    %v551 = vld [vmem:[#allocation7 + $0x14] sm:$0xf]
    %v552 = vld [vmem:[#allocation7 + $0x18] sm:$0xf]
    %v553 = vld [vmem:[#allocation7 + $0x1c] sm:$0xf]
    %v554 = vld [vmem:[#allocation7 + $0x20] sm:$0xf]
    %v555 = vld [vmem:[#allocation7 + $0x24] sm:$0xf]
    %v556 = vld [vmem:[#allocation7 + $0x28] sm:$0xf]
    %v557 = vld [vmem:[#allocation7 + $0x2c] sm:$0xf]
    %v558 = vld [vmem:[#allocation7 + $0x30] sm:$0xf]
    %v559 = vld [vmem:[#allocation7 + $0x34] sm:$0xf]
    %v560 = vld [vmem:[#allocation7 + $0x38] sm:$0xf]
    %v561 = vld [vmem:[#allocation7 + $0x3c] sm:$0xf]
    %v578 = vunpack.c.l.b16 %v546
    %v579 = vunpack.c.l.b16 %v547
    %v580 = vunpack.c.l.b16 %v548
    %v581 = vunpack.c.l.b16 %v549
    %v582 = vunpack.c.l.b16 %v550
    %v583 = vunpack.c.l.b16 %v551
    %v584 = vunpack.c.l.b16 %v552
    %v585 = vunpack.c.l.b16 %v553
    %v586 = vunpack.c.l.b16 %v554
    %v587 = vunpack.c.l.b16 %v555
    %v588 = vunpack.c.l.b16 %v556
    %v589 = vunpack.c.l.b16 %v557
    %v590 = vunpack.c.l.b16 %v558
    %v591 = vunpack.c.l.b16 %v559
    %v592 = vunpack.c.l.b16 %v560
    %v593 = vunpack.c.l.b16 %v561
    %v594 = vpack.c.b16 %v579, %v578
    %v595 = vpack.c.b16 %v581, %v580
    %v596 = vpack.c.b16 %v583, %v582
    %v597 = vpack.c.b16 %v585, %v584
    %v598 = vpack.c.b16 %v587, %v586
    %v599 = vpack.c.b16 %v589, %v588
    %v600 = vpack.c.b16 %v591, %v590
    %v601 = vpack.c.b16 %v593, %v592
    %610 = vmatprep.subr.bf16.mxu0 0
    %611 = vmatpush1.bf16.msra.mxu0 %v594
    %612 = vmatprep.subr.bf16.mxu0 0
    %613 = vmatpush1.bf16.msra.mxu0 %v595
    %614 = vmatprep.subr.bf16.mxu0 0
    %615 = vmatpush1.bf16.msra.mxu0 %v596
    %616 = vmatprep.subr.bf16.mxu0 0
    %617 = vmatpush1.bf16.msra.mxu0 %v597
    %618 = vmatprep.subr.bf16.mxu0 0
    %619 = vmatpush1.bf16.msra.mxu0 %v598
    %620 = vmatprep.subr.bf16.mxu0 0
    %621 = vmatpush1.bf16.msra.mxu0 %v599
    %622 = vmatprep.subr.bf16.mxu0 0
    %623 = vmatpush1.bf16.msra.mxu0 %v600
    %624 = vmatprep.subr.bf16.mxu0 0
    %625 = vmatpush1.bf16.msra.mxu0 %v601
    %626 = vmatprep.subr.bf16.mxu0 0
    %627 = vmatpush1.bf16.msra.mxu0 0
    %628 = vmatprep.subr.bf16.mxu0 0
    %629 = vmatpush1.bf16.msra.mxu0 0
    %630 = vmatprep.subr.bf16.mxu0 0
    %631 = vmatpush1.bf16.msra.mxu0 0
    %632 = vmatprep.subr.bf16.mxu0 0
    %633 = vmatpush1.bf16.msra.mxu0 0
    %634 = vmatprep.subr.bf16.mxu0 0
    %635 = vmatpush1.bf16.msra.mxu0 0
    %636 = vmatprep.subr.bf16.mxu0 0
    %637 = vmatpush1.bf16.msra.mxu0 0
    %638 = vmatprep.subr.bf16.mxu0 0
    %639 = vmatpush1.bf16.msra.mxu0 0
    %640 = vmatprep.subr.bf16.mxu0 0
    %641 = vmatpush1.bf16.msra.mxu0 0
    %642 = vmatprep.mubr.bf16.mxu0 0
    %643 = vmatmul.mubr.bf16.gmra.mrb[0].mxu0 %v538
    %v644 = vpop.f32.mrb[0].mxu0
    %v645 = vadd.f32 0.0, %v644
    %v646 = vpop.f32.mrb[0].mxu0
    %v647 = vpop.f32.mrb[0].mxu0
    %v648 = vadd.f32 0.0, %v647
    %v649 = vpop.f32.mrb[0].mxu0
    %650 = vmatprep.mubr.bf16.mxu0 0
    %651 = vmatmul.mubr.bf16.gmra.mrb[0].mxu0 %v539
    %v652 = vpop.f32.mrb[0].mxu0
    %v653 = vadd.f32 0.0, %v652
    %v654 = vpop.f32.mrb[0].mxu0
    %v655 = vpop.f32.mrb[0].mxu0
    %v656 = vadd.f32 0.0, %v655
    %v657 = vpop.f32.mrb[0].mxu0
    %658 = vmatprep.mubr.bf16.mxu0 0
    %659 = vmatmul.mubr.bf16.gmra.mrb[0].mxu0 %v540
    %v660 = vpop.f32.mrb[0].mxu0
    %v661 = vadd.f32 0.0, %v660
    %v662 = vpop.f32.mrb[0].mxu0
    %v663 = vpop.f32.mrb[0].mxu0
    %v664 = vadd.f32 0.0, %v663
    %v665 = vpop.f32.mrb[0].mxu0
    %666 = vmatprep.mubr.bf16.mxu0 0
    %667 = vmatmul.mubr.bf16.gmra.mrb[0].mxu0 %v541
    %v668 = vpop.f32.mrb[0].mxu0
    %v669 = vadd.f32 0.0, %v668
    %v670 = vpop.f32.mrb[0].mxu0
    %v671 = vpop.f32.mrb[0].mxu0
    %v672 = vadd.f32 0.0, %v671
    %v673 = vpop.f32.mrb[0].mxu0
    %674 = vmatprep.mubr.bf16.mxu0 0
    %675 = vmatmul.mubr.bf16.gmra.mrb[0].mxu0 %v542
    %v676 = vpop.f32.mrb[0].mxu0
    %v677 = vadd.f32 0.0, %v676
    %v678 = vpop.f32.mrb[0].mxu0
    %v679 = vpop.f32.mrb[0].mxu0
    %v680 = vadd.f32 0.0, %v679
    %v681 = vpop.f32.mrb[0].mxu0
    %682 = vmatprep.mubr.bf16.mxu0 0
    %683 = vmatmul.mubr.bf16.gmra.mrb[0].mxu0 %v543
    %v684 = vpop.f32.mrb[0].mxu0
    %v685 = vadd.f32 0.0, %v684
    %v686 = vpop.f32.mrb[0].mxu0
    %v687 = vpop.f32.mrb[0].mxu0
    %v688 = vadd.f32 0.0, %v687
    %v689 = vpop.f32.mrb[0].mxu0
    %690 = vmatprep.mubr.bf16.mxu0 0
    %691 = vmatmul.mubr.bf16.gmra.mrb[0].mxu0 %v544
    %v692 = vpop.f32.mrb[0].mxu0
    %v693 = vadd.f32 0.0, %v692
    %v694 = vpop.f32.mrb[0].mxu0
    %v695 = vpop.f32.mrb[0].mxu0
    %v696 = vadd.f32 0.0, %v695
    %v697 = vpop.f32.mrb[0].mxu0
    %698 = vmatprep.mubr.bf16.mxu0 0
    %699 = vmatmul.mubr.bf16.gmra.mrb[0].mxu0 %v545
    %v700 = vpop.f32.mrb[0].mxu0
    %v701 = vadd.f32 0.0, %v700
    %v702 = vpop.f32.mrb[0].mxu0
    %v703 = vpop.f32.mrb[0].mxu0
    %v704 = vadd.f32 0.0, %v703
    %v705 = vpop.f32.mrb[0].mxu0
    %706 = vdwg.mxu0
    %v707 = vmul.f32 %v285, %v645
    %v708 = vmul.f32 %v290, %v648
    %v709 = vmul.f32 %v295, %v653
    %v710 = vmul.f32 %v300, %v656
    %v711 = vmul.f32 %v305, %v661
    %v712 = vmul.f32 %v310, %v664
    %v713 = vmul.f32 %v315, %v669
    %v714 = vmul.f32 %v320, %v672
    %v715 = vmul.f32 %v325, %v677
    %v716 = vmul.f32 %v330, %v680
    %v717 = vmul.f32 %v335, %v685
    %v718 = vmul.f32 %v340, %v688
    %v719 = vmul.f32 %v345, %v693
    %v720 = vmul.f32 %v350, %v696
    %v721 = vmul.f32 %v355, %v701
    %v722 = vmul.f32 %v360, %v704
    %v723 = vpack.c.bf16 %v708, %v707
    %v724 = vpack.c.bf16 %v710, %v709
    %v725 = vpack.c.bf16 %v712, %v711
    %v726 = vpack.c.bf16 %v714, %v713
    %v727 = vpack.c.bf16 %v716, %v715
    %v728 = vpack.c.bf16 %v718, %v717
    %v729 = vpack.c.bf16 %v720, %v719
    %v730 = vpack.c.bf16 %v722, %v721
    %731 = vmatprep.subr.bf16.mxu0 0
    %732 = vmatpush1.bf16.msra.mxu0 %v723
    %733 = vmatprep.subr.bf16.mxu0 0
    %734 = vmatpush1.bf16.msra.mxu0 %v724
    %735 = vmatprep.subr.bf16.mxu0 0
    %736 = vmatpush1.bf16.msra.mxu0 %v725
    %737 = vmatprep.subr.bf16.mxu0 0
    %738 = vmatpush1.bf16.msra.mxu0 %v726
    %739 = vmatprep.subr.bf16.mxu0 0
    %740 = vmatpush1.bf16.msra.mxu0 %v727
    %741 = vmatprep.subr.bf16.mxu0 0
    %742 = vmatpush1.bf16.msra.mxu0 %v728
    %743 = vmatprep.subr.bf16.mxu0 0
    %744 = vmatpush1.bf16.msra.mxu0 %v729
    %745 = vmatprep.subr.bf16.mxu0 0
    %746 = vmatpush1.bf16.msra.mxu0 %v730
    %747 = vmatprep.subr.bf16.mxu0 0
    %748 = vmatpush1.bf16.msra.mxu0 0
    %749 = vmatprep.subr.bf16.mxu0 0
    %750 = vmatpush1.bf16.msra.mxu0 0
    %751 = vmatprep.subr.bf16.mxu0 0
    %752 = vmatpush1.bf16.msra.mxu0 0
    %753 = vmatprep.subr.bf16.mxu0 0
    %754 = vmatpush1.bf16.msra.mxu0 0
    %755 = vmatprep.subr.bf16.mxu0 0
    %756 = vmatpush1.bf16.msra.mxu0 0
    %757 = vmatprep.subr.bf16.mxu0 0
    %758 = vmatpush1.bf16.msra.mxu0 0
    %759 = vmatprep.subr.bf16.mxu0 0
    %760 = vmatpush1.bf16.msra.mxu0 0
    %761 = vmatprep.subr.bf16.mxu0 0
    %762 = vmatpush1.bf16.msra.mxu0 0
    %763 = vmatprep.mubr.bf16.mxu0 0
    %764 = vmatmul.mubr.bf16.gmra.mrb[0].mxu0 %v73
    %v765 = vpop.f32.mrb[0].mxu0
    %v766 = vadd.f32 0.0, %v765
    %v767 = vpop.f32.mrb[0].mxu0
    %v768 = vpop.f32.mrb[0].mxu0
    %v769 = vadd.f32 0.0, %v768
    %v770 = vpop.f32.mrb[0].mxu0
    %771 = vmatprep.mubr.bf16.mxu0 0
    %772 = vmatmul.mubr.bf16.gmra.mrb[0].mxu0 %v74
    %v773 = vpop.f32.mrb[0].mxu0
    %v774 = vadd.f32 0.0, %v773
    %v775 = vpop.f32.mrb[0].mxu0
    %v776 = vpop.f32.mrb[0].mxu0
    %v777 = vadd.f32 0.0, %v776
    %v778 = vpop.f32.mrb[0].mxu0
    %779 = vmatprep.mubr.bf16.mxu0 0
    %780 = vmatmul.mubr.bf16.gmra.mrb[0].mxu0 %v75
    %v781 = vpop.f32.mrb[0].mxu0
    %v782 = vadd.f32 0.0, %v781
    %v783 = vpop.f32.mrb[0].mxu0
    %v784 = vpop.f32.mrb[0].mxu0
    %v785 = vadd.f32 0.0, %v784
    %v786 = vpop.f32.mrb[0].mxu0
    %787 = vmatprep.mubr.bf16.mxu0 0
    %788 = vmatmul.mubr.bf16.gmra.mrb[0].mxu0 %v76
    %v789 = vpop.f32.mrb[0].mxu0
    %v790 = vadd.f32 0.0, %v789
    %v791 = vpop.f32.mrb[0].mxu0
    %v792 = vpop.f32.mrb[0].mxu0
    %v793 = vadd.f32 0.0, %v792
    %v794 = vpop.f32.mrb[0].mxu0
    %795 = vmatprep.mubr.bf16.mxu0 0
    %796 = vmatmul.mubr.bf16.gmra.mrb[0].mxu0 %v77
    %v797 = vpop.f32.mrb[0].mxu0
    %v798 = vadd.f32 0.0, %v797
    %v799 = vpop.f32.mrb[0].mxu0
    %v800 = vpop.f32.mrb[0].mxu0
    %v801 = vadd.f32 0.0, %v800
    %v802 = vpop.f32.mrb[0].mxu0
    %803 = vmatprep.mubr.bf16.mxu0 0
    %804 = vmatmul.mubr.bf16.gmra.mrb[0].mxu0 %v78
    %v805 = vpop.f32.mrb[0].mxu0
    %v806 = vadd.f32 0.0, %v805
    %v807 = vpop.f32.mrb[0].mxu0
    %v808 = vpop.f32.mrb[0].mxu0
    %v809 = vadd.f32 0.0, %v808
    %v810 = vpop.f32.mrb[0].mxu0
    %811 = vmatprep.mubr.bf16.mxu0 0
    %812 = vmatmul.mubr.bf16.gmra.mrb[0].mxu0 %v79
    %v813 = vpop.f32.mrb[0].mxu0
    %v814 = vadd.f32 0.0, %v813
    %v815 = vpop.f32.mrb[0].mxu0
    %v816 = vpop.f32.mrb[0].mxu0
    %v817 = vadd.f32 0.0, %v816
    %v818 = vpop.f32.mrb[0].mxu0
    %819 = vmatprep.mubr.bf16.mxu0 0
    %820 = vmatmul.mubr.bf16.gmra.mrb[0].mxu0 %v80
    %v821 = vpop.f32.mrb[0].mxu0
    %v822 = vadd.f32 0.0, %v821
    %v823 = vpop.f32.mrb[0].mxu0
    %v824 = vpop.f32.mrb[0].mxu0
    %v825 = vadd.f32 0.0, %v824
    %v826 = vpop.f32.mrb[0].mxu0
    %827 = vdwg.mxu0
    %v828 = vmul.f32 %v285, %v766
    %v829 = vmul.f32 %v290, %v769
    %v830 = vmul.f32 %v295, %v774
    %v831 = vmul.f32 %v300, %v777
    %v832 = vmul.f32 %v305, %v782
    %v833 = vmul.f32 %v310, %v785
    %v834 = vmul.f32 %v315, %v790
    %v835 = vmul.f32 %v320, %v793
    %v836 = vmul.f32 %v325, %v798
    %v837 = vmul.f32 %v330, %v801
    %v838 = vmul.f32 %v335, %v806
    %v839 = vmul.f32 %v340, %v809
    %v840 = vmul.f32 %v345, %v814
    %v841 = vmul.f32 %v350, %v817
    %v842 = vmul.f32 %v355, %v822
    %v843 = vmul.f32 %v360, %v825
    %v844 = vld [vmem:[%s6] sm:$0x1]
    %v846 = vlaneseq
    %v847 = vshrl.u32 %v846, 7
    %v848 = vsub.s32 0, %v847
    %v849 = vrot.slane %v844, %v848
    %v851 = vadd.f32 %v828, %v849
    %v852 = vadd.f32 %v829, %v849
    %v853 = vadd.f32 %v830, %v849
    %v854 = vadd.f32 %v831, %v849
    %v855 = vadd.f32 %v832, %v849
    %v856 = vadd.f32 %v833, %v849
    %v857 = vadd.f32 %v834, %v849
    %v858 = vadd.f32 %v835, %v849
    %v859 = vadd.f32 %v836, %v849
    %v860 = vadd.f32 %v837, %v849
    %v861 = vadd.f32 %v838, %v849
    %v862 = vadd.f32 %v839, %v849
    %v863 = vadd.f32 %v840, %v849
    %v864 = vadd.f32 %v841, %v849
    %v865 = vadd.f32 %v842, %v849
    %v866 = vadd.f32 %v843, %v849
    %867 = vmax.xlane.f32.xlu0 %v851
    %v868 = vpop.xlane.xlu0 %867
    %869 = vmax.xlane.f32.xlu0 %v852
    %v870 = vpop.xlane.xlu0 %869
    %871 = vmax.xlane.f32.xlu0 %v853
    %v872 = vpop.xlane.xlu0 %871
    %873 = vmax.xlane.f32.xlu0 %v854
    %v874 = vpop.xlane.xlu0 %873
    %875 = vmax.xlane.f32.xlu0 %v855
    %v876 = vpop.xlane.xlu0 %875
    %877 = vmax.xlane.f32.xlu0 %v856
    %v878 = vpop.xlane.xlu0 %877
    %879 = vmax.xlane.f32.xlu0 %v857
    %v880 = vpop.xlane.xlu0 %879
    %881 = vmax.xlane.f32.xlu0 %v858
    %v882 = vpop.xlane.xlu0 %881
    %883 = vmax.xlane.f32.xlu0 %v859
    %v884 = vpop.xlane.xlu0 %883
    %885 = vmax.xlane.f32.xlu0 %v860
    %v886 = vpop.xlane.xlu0 %885
    %887 = vmax.xlane.f32.xlu0 %v861
    %v888 = vpop.xlane.xlu0 %887
    %889 = vmax.xlane.f32.xlu0 %v862
    %v890 = vpop.xlane.xlu0 %889
    %891 = vmax.xlane.f32.xlu0 %v863
    %v892 = vpop.xlane.xlu0 %891
    %893 = vmax.xlane.f32.xlu0 %v864
    %v894 = vpop.xlane.xlu0 %893
    %895 = vmax.xlane.f32.xlu0 %v865
    %v896 = vpop.xlane.xlu0 %895
    %897 = vmax.xlane.f32.xlu0 %v866
    %v898 = vpop.xlane.xlu0 %897
    %v899 = vsub.f32 %v851, %v868
    %v900 = vsub.f32 %v852, %v870
    %v901 = vsub.f32 %v853, %v872
    %v902 = vsub.f32 %v854, %v874
    %v903 = vsub.f32 %v855, %v876
    %v904 = vsub.f32 %v856, %v878
    %v905 = vsub.f32 %v857, %v880
    %v906 = vsub.f32 %v858, %v882
    %v907 = vsub.f32 %v859, %v884
    %v908 = vsub.f32 %v860, %v886
    %v909 = vsub.f32 %v861, %v888
    %v910 = vsub.f32 %v862, %v890
    %v911 = vsub.f32 %v863, %v892
    %v912 = vsub.f32 %v864, %v894
    %v913 = vsub.f32 %v865, %v896
    %v914 = vsub.f32 %v866, %v898
    %v915 = vmul.f32 %v899, 1.442695
    %v916 = vpow.pop %v915
    %v917 = vmul.f32 %v900, 1.442695
    %v918 = vpow.pop %v917
    %v919 = vmul.f32 %v901, 1.442695
    %v920 = vpow.pop %v919
    %v921 = vmul.f32 %v902, 1.442695
    %v922 = vpow.pop %v921
    %v923 = vmul.f32 %v903, 1.442695
    %v924 = vpow.pop %v923
    %v925 = vmul.f32 %v904, 1.442695
    %v926 = vpow.pop %v925
    %v927 = vmul.f32 %v905, 1.442695
    %v928 = vpow.pop %v927
    %v929 = vmul.f32 %v906, 1.442695
    %v930 = vpow.pop %v929
    %v931 = vmul.f32 %v907, 1.442695
    %v932 = vpow.pop %v931
    %v933 = vmul.f32 %v908, 1.442695
    %v934 = vpow.pop %v933
    %v935 = vmul.f32 %v909, 1.442695
    %v936 = vpow.pop %v935
    %v937 = vmul.f32 %v910, 1.442695
    %v938 = vpow.pop %v937
    %v939 = vmul.f32 %v911, 1.442695
    %v940 = vpow.pop %v939
    %v941 = vmul.f32 %v912, 1.442695
    %v942 = vpow.pop %v941
    %v943 = vmul.f32 %v913, 1.442695
    %v944 = vpow.pop %v943
    %v945 = vmul.f32 %v914, 1.442695
    %v946 = vpow.pop %v945
    %947 = vadd.xlane.f32.xlu0 %v916
    %v948 = vpop.xlane.xlu0 %947
    %949 = vadd.xlane.f32.xlu0 %v918
    %v950 = vpop.xlane.xlu0 %949
    %951 = vadd.xlane.f32.xlu0 %v920
    %v952 = vpop.xlane.xlu0 %951
    %953 = vadd.xlane.f32.xlu0 %v922
    %v954 = vpop.xlane.xlu0 %953
    %955 = vadd.xlane.f32.xlu0 %v924
    %v956 = vpop.xlane.xlu0 %955
    %957 = vadd.xlane.f32.xlu0 %v926
    %v958 = vpop.xlane.xlu0 %957
    %959 = vadd.xlane.f32.xlu0 %v928
    %v960 = vpop.xlane.xlu0 %959
    %961 = vadd.xlane.f32.xlu0 %v930
    %v962 = vpop.xlane.xlu0 %961
    %963 = vadd.xlane.f32.xlu0 %v932
    %v964 = vpop.xlane.xlu0 %963
    %965 = vadd.xlane.f32.xlu0 %v934
    %v966 = vpop.xlane.xlu0 %965
    %967 = vadd.xlane.f32.xlu0 %v936
    %v968 = vpop.xlane.xlu0 %967
    %969 = vadd.xlane.f32.xlu0 %v938
    %v970 = vpop.xlane.xlu0 %969
    %971 = vadd.xlane.f32.xlu0 %v940
    %v972 = vpop.xlane.xlu0 %971
    %973 = vadd.xlane.f32.xlu0 %v942
    %v974 = vpop.xlane.xlu0 %973
    %975 = vadd.xlane.f32.xlu0 %v944
    %v976 = vpop.xlane.xlu0 %975
    %977 = vadd.xlane.f32.xlu0 %v946
    %v978 = vpop.xlane.xlu0 %977
    %v979 = vrcp.pop %v948
    %v980 = vrcp.pop %v950
    %v981 = vrcp.pop %v952
    %v982 = vrcp.pop %v954
    %v983 = vrcp.pop %v956
    %v984 = vrcp.pop %v958
    %v985 = vrcp.pop %v960
    %v986 = vrcp.pop %v962
    %v987 = vrcp.pop %v964
    %v988 = vrcp.pop %v966
    %v989 = vrcp.pop %v968
    %v990 = vrcp.pop %v970
    %v991 = vrcp.pop %v972
    %v992 = vrcp.pop %v974
    %v993 = vrcp.pop %v976
    %v994 = vrcp.pop %v978
    %v995 = vmul.f32 %v916, %v979
    %v996 = vmul.f32 %v918, %v980
    %v997 = vmul.f32 %v920, %v981
    %v998 = vmul.f32 %v922, %v982
    %v999 = vmul.f32 %v924, %v983
    %v1000 = vmul.f32 %v926, %v984
    %v1001 = vmul.f32 %v928, %v985
    %v1002 = vmul.f32 %v930, %v986
    %v1003 = vmul.f32 %v932, %v987
    %v1004 = vmul.f32 %v934, %v988
    %v1005 = vmul.f32 %v936, %v989
    %v1006 = vmul.f32 %v938, %v990
    %v1007 = vmul.f32 %v940, %v991
    %v1008 = vmul.f32 %v942, %v992
    %v1009 = vmul.f32 %v944, %v993
    %v1010 = vmul.f32 %v946, %v994
    %1011 = vst [vmem:[#allocation8] sm:$0xff] %v995
    %1012 = vst [vmem:[#allocation8 + $0x8] sm:$0xff] %v996
    %1013 = vst [vmem:[#allocation8 + $0x10] sm:$0xff] %v997
    %1014 = vst [vmem:[#allocation8 + $0x18] sm:$0xff] %v998
    %1015 = vst [vmem:[#allocation8 + $0x20] sm:$0xff] %v999
    %1016 = vst [vmem:[#allocation8 + $0x28] sm:$0xff] %v1000
    %1017 = vst [vmem:[#allocation8 + $0x30] sm:$0xff] %v1001
    %1018 = vst [vmem:[#allocation8 + $0x38] sm:$0xff] %v1002
    %1019 = vst [vmem:[#allocation8 + $0x40] sm:$0xff] %v1003
    %1020 = vst [vmem:[#allocation8 + $0x48] sm:$0xff] %v1004
    %1021 = vst [vmem:[#allocation8 + $0x50] sm:$0xff] %v1005
    %1022 = vst [vmem:[#allocation8 + $0x58] sm:$0xff] %v1006
    %1023 = vst [vmem:[#allocation8 + $0x60] sm:$0xff] %v1007
    %1024 = vst [vmem:[#allocation8 + $0x68] sm:$0xff] %v1008
    %1025 = vst [vmem:[#allocation8 + $0x70] sm:$0xff] %v1009
    %1026 = vst [vmem:[#allocation8 + $0x78] sm:$0xff] %v1010
    // Predicated region
    $region42: #{tpu_custom_call.1} parent=1 // pred_check
      _
    $region43: #{tpu_custom_call.1} parent=1 // pred_check_branch
      %1028 = sbr.rel (0) target = $region45
    $region44: #{tpu_custom_call.1} parent=1 // pred_region
      %s1030 = ssub.s32 2048, 2048
      %1031 = vsyncadd [#allocation4], %s1030
      %s1032 = sshll.u32 [#allocation8], 4
      %s1033 = int_to_ptr.vmem [resolvable:$true] %s1032
      %1038 = dma.vmem_to_hbm [thread:$0]  %s1033, 2048, %s7, [#allocation4], 128, 128, 8
    $region45: #{tpu_custom_call.1} parent=1 // pred_fallthru
      _
    // Predicated region
    $region46: #{tpu_custom_call.1} parent=1 // pred_check
      _
    $region47: #{tpu_custom_call.1} parent=1 // pred_check_branch
      %1040 = sbr.rel (0) target = $region49
    $region48: #{tpu_custom_call.1} parent=1 // pred_region
      %1041 = dma.done [#allocation4], 2048
    $region49: #{tpu_custom_call.1} parent=1 // pred_fallthru
      _
    %1042 = vsyncpa [#allocation3], 1
    %1043 = vsyncpa [#allocation6], 1
    %1044 = vsyncpa [#allocation4], 1

</llo_original>
